<compile_context>
chip_gen: v5e
topology: v5e:2x2
jax: 0.10.0
libtpu: 0.0.40
codegen_flags: <defaults>
</compile_context>

<pallas_src>
import functools

import jax
import jax.numpy as jnp
from jax import lax
from jax.experimental import pallas as pl
from jax.experimental.pallas import tpu as pltpu


_LANES = 128
_SUBLANES = 8


def _pow_const(x, e):
    """x**e for a compile-time float exponent, with TPU-friendly lowerings."""
    if e == 0.0:
        return jnp.ones_like(x)
    if e == 1.0:
        return x
    if e == -1.0:
        return 1.0 / x
    if e == 2.0:
        return x * x
    if e == 0.5:
        return jnp.sqrt(x)
    if e == -0.5:
        return lax.rsqrt(x)
    return jnp.exp(e * jnp.log(x))  # general case -> EUP exp/log


def _gamma_kernel(y_ref, yhat_ref, out_ref, *, p, n_elems, needs_mask):
    tile_rows, lanes = y_ref.shape

    y = y_ref[...].astype(jnp.float32)
    yh = yhat_ref[...].astype(jnp.float32)

    e1 = 1.0 - p
    e2 = 2.0 - p
    # NOTE: with the module's p == 2, e2 == 0 and the second term is
    # ones / 0.0 == +inf, exactly matching torch.pow(y_hat, 0) / 0.
    term = (-y) * _pow_const(yh, e1) / e1 + _pow_const(yh, e2) / e2

    if needs_mask:
        # Mask the padded ragged tail (global flat index >= n_elems) so pad
        # elements never contribute (and can't inject NaNs from 0-valued
        # padding).  Only compiled in when padding actually exists.
        row0 = pl.program_id(0) * tile_rows
        ridx = lax.broadcasted_iota(jnp.int32, (tile_rows, lanes), 0)
        lidx = lax.broadcasted_iota(jnp.int32, (tile_rows, lanes), 1)
        gidx = (row0 + ridx) * lanes + lidx
        term = jnp.where(gidx < n_elems, term, 0.0)

    # Fold the (tile_rows, 128) tile into a single (8, 128) vreg of partial
    # sums: the reshape keeps (8, 128) sub-tiles intact (no relayout), and
    # the axis-0 reduce is pure vreg+vreg VPU adds (no XLU, no scalar chain).
    out_ref[...] = jnp.sum(
        term.reshape(tile_rows // _SUBLANES, _SUBLANES, lanes), axis=0
    )


def gamma_loss(y, y_hat, *, p=2, tile_rows=2048, vmem_limit_bytes=None):
    """mean(-y * y_hat**(1-p)/(1-p) + y_hat**(2-p)/(2-p)); p=2 per GammaLoss.

    tile_rows: rows of 128 lanes streamed per grid step (sweep 2048-8192;
    >= 4096 may need vmem_limit_bytes raised, e.g. 48<<20 on v7x, 64<<20 on
    v5e/v6e).
    """
    assert y.shape == y_hat.shape, "shapes must match"
    n = int(y.size)
    # TODO(synk): int32 in-kernel flat indices limit n to < 2**31 elements.

    rows = pl.cdiv(n, _LANES)
    rows8 = pl.cdiv(rows, _SUBLANES) * _SUBLANES
    tile_rows = max(_SUBLANES, min(int(tile_rows), rows8))
    tile_rows -= tile_rows % _SUBLANES
    rows_padded = pl.cdiv(rows, tile_rows) * tile_rows
    pad = rows_padded * _LANES - n

    yf = y.reshape(-1)
    yhf = y_hat.reshape(-1)
    if pad:
        # Pad values are irrelevant: the kernel masks flat index >= n.
        yf = jnp.pad(yf, (0, pad))
        yhf = jnp.pad(yhf, (0, pad))
    yf = yf.reshape(rows_padded, _LANES)
    yhf = yhf.reshape(rows_padded, _LANES)

    num_blocks = rows_padded // tile_rows
    kernel = functools.partial(
        _gamma_kernel, p=float(p), n_elems=n, needs_mask=bool(pad)
    )

    partials = pl.pallas_call(
        kernel,
        out_shape=jax.ShapeDtypeStruct(
            (num_blocks * _SUBLANES, _LANES), jnp.float32
        ),
        grid_spec=pltpu.PrefetchScalarGridSpec(
            num_scalar_prefetch=0,
            grid=(num_blocks,),
            in_specs=[
                pl.BlockSpec((tile_rows, _LANES), lambda i: (i, 0)),
                pl.BlockSpec((tile_rows, _LANES), lambda i: (i, 0)),
            ],
            out_specs=pl.BlockSpec((_SUBLANES, _LANES), lambda i: (i, 0)),
        ),
        compiler_params=pltpu.CompilerParams(
            dimension_semantics=("parallel",),
            vmem_limit_bytes=vmem_limit_bytes,
        ),
    )(yf, yhf)

    # Tiny follow-up reduction (num_blocks * 4 KiB) + mean scale.
    return jnp.sum(partials) * (1.0 / n)


if __name__ == "__main__":
    key = jax.random.PRNGKey(0)
    k1, k2 = jax.random.split(key)

    # Small positive inputs (gamma-loss domain), NCHW-like regression maps.
    shape = (2, 4, 16, 16)
    y = jax.random.uniform(k1, shape, dtype=jnp.float32, minval=0.5, maxval=2.0)
    y_hat = jax.random.uniform(k2, shape, dtype=jnp.float32, minval=0.5, maxval=2.0)

    def ref_loss(yy, yyh, pp):
        t = -yy * jnp.power(yyh, 1 - pp) / (1 - pp) + jnp.power(yyh, 2 - pp) / (2 - pp)
        return jnp.mean(t)

    # 1) Faithful to the module: p = 2 -> second term is 1/0 = +inf elementwise
    #    (exactly what torch computes); kernel and reference both return +inf.
    loss2 = gamma_loss(y, y_hat, p=2)
    jax.block_until_ready(loss2)
    ref2 = ref_loss(y, y_hat, 2)
    assert jnp.allclose(loss2, ref2), (loss2, ref2)  # same-sign inf compares equal

    # 2) Non-degenerate Tweedie exponent to numerically validate the math path.
    loss15 = gamma_loss(y, y_hat, p=1.5)
    jax.block_until_ready(loss15)
    ref15 = ref_loss(y, y_hat, 1.5)
    assert jnp.allclose(loss15, ref15, rtol=1e-4, atol=1e-6), (loss15, ref15)

    # 3) Ragged / padded path (size not a multiple of 128) to exercise the
    #    compile-time mask branch.
    yr = jax.random.uniform(k1, (3, 5, 7), dtype=jnp.float32, minval=0.5, maxval=2.0)
    yhr = jax.random.uniform(k2, (3, 5, 7), dtype=jnp.float32, minval=0.5, maxval=2.0)
    lossr = gamma_loss(yr, yhr, p=1.5)
    jax.block_until_ready(lossr)
    refr = ref_loss(yr, yhr, 1.5)
    assert jnp.allclose(lossr, refr, rtol=1e-4, atol=1e-6), (lossr, refr)

    print("KERNEL_OK")
</pallas_src>

<mosaic_0001>
module attributes {stable_mosaic.version = 11 : i64} {
  func.func @_gamma_kernel(%arg0: i32, %arg1: memref<16x128xf32, #tpu.memory_space<vmem>>, %arg2: memref<16x128xf32, #tpu.memory_space<vmem>>, %arg3: memref<8x128xf32, #tpu.memory_space<vmem>>) attributes {dimension_semantics = [#tpu.dimension_semantics<parallel>], iteration_bounds = array<i64: 1>, scalar_prefetch = 0 : i64, scratch_operands = 0 : i64, tpu.core_type = #tpu.core_type<tc>, window_params = [{transform_indices = @transform_0, window_bounds = array<i64: 16, 128>}, {transform_indices = @transform_1, window_bounds = array<i64: 16, 128>}, {transform_indices = @transform_2, window_bounds = array<i64: 8, 128>}]} {
    %c0 = arith.constant 0 : index
    %c0_0 = arith.constant 0 : index
    %0 = vector.load %arg1[%c0, %c0_0] : memref<16x128xf32, #tpu.memory_space<vmem>>, vector<16x128xf32>
    %c0_1 = arith.constant 0 : index
    %c0_2 = arith.constant 0 : index
    %1 = vector.load %arg2[%c0_1, %c0_2] : memref<16x128xf32, #tpu.memory_space<vmem>>, vector<16x128xf32>
    %cst = arith.constant 0.000000e+00 : f32
    %2 = vector.broadcast %cst : f32 to vector<16x128xf32>
    %3 = arith.subf %2, %0 : vector<16x128xf32>
    %cst_3 = arith.constant 1.000000e+00 : f32
    %4 = vector.broadcast %cst_3 : f32 to vector<16x128xf32>
    %5 = arith.divf %4, %1 : vector<16x128xf32>
    %6 = arith.mulf %3, %5 : vector<16x128xf32>
    %cst_4 = arith.constant -1.000000e+00 : f32
    %7 = vector.broadcast %cst_4 : f32 to vector<16x128xf32>
    %8 = arith.divf %6, %7 : vector<16x128xf32>
    %cst_5 = arith.constant 1.000000e+00 : f32
    %9 = vector.broadcast %cst_5 : f32 to vector<16x128xf32>
    %cst_6 = arith.constant 0.000000e+00 : f32
    %10 = vector.broadcast %cst_6 : f32 to vector<16x128xf32>
    %11 = arith.divf %9, %10 : vector<16x128xf32>
    %12 = arith.addf %8, %11 : vector<16x128xf32>
    %13 = vector.shape_cast %12 : vector<16x128xf32> to vector<2x8x128xf32>
    %cst_7 = arith.constant dense<0.000000e+00> : vector<8x128xf32>
    %14 = vector.multi_reduction <add>, %13, %cst_7 [0] : vector<2x8x128xf32> to vector<8x128xf32>
    %c0_8 = arith.constant 0 : index
    %c0_9 = arith.constant 0 : index
    %15 = vector.load %arg3[%c0_8, %c0_9] : memref<8x128xf32, #tpu.memory_space<vmem>>, vector<8x128xf32>
    tpu.vector_store %arg3[%c0_8, %c0_9], %14 {strides = array<i32>} : memref<8x128xf32, #tpu.memory_space<vmem>>, vector<8x128xf32>,
    return
  }
  func.func @transform_0(%arg0: i32) -> (i32, i32) {
    %c0_i32 = arith.constant 0 : i32
    %c0_i32_0 = arith.constant 0 : i32
    return %arg0, %c0_i32 : i32, i32
  }
  func.func @transform_1(%arg0: i32) -> (i32, i32) {
    %c0_i32 = arith.constant 0 : i32
    %c0_i32_0 = arith.constant 0 : i32
    return %arg0, %c0_i32 : i32, i32
  }
  func.func @transform_2(%arg0: i32) -> (i32, i32) {
    %c0_i32 = arith.constant 0 : i32
    %c0_i32_0 = arith.constant 0 : i32
    return %arg0, %c0_i32 : i32, i32
  }
}

</mosaic_0001>

<llo_original>
// kernel: tpu_custom_call.1
$region0: #{tpu_custom_call.1}
  #allocation0 [shape = 'u32[]', space=smem, size = 0x4, offset = 0x4, fixed_abs, tag = 'smem constant byte address 0x4 - core index']
  #allocation1 [shape = 'u32[72,128]{1,0:T(1,128)}', space=vmem, size = 0x9000, scoped, tag = 'internal scratch']
  %s0 = inlined_call_operand.hbm [shape: f32[16,128], index: 0, kind: input, shape index: {}]
  %s1 = inlined_call_operand.hbm [shape: f32[16,128], index: 1, kind: input, shape index: {}]
  %s2 = inlined_call_operand.hbm [shape: f32[8,128], index: 2, kind: output, shape index: {}]
  %s3 = sld [smem:[#allocation0]]
  $region26: #{tpu_custom_call.1} parent=0
    _
  %s5 = ssub.s32 1, %s3
  %s6 = scalar_select 0, %s5, %s3
  $region1: #{tpu_custom_call.1} parent=0
    #allocation2 [shape = 'u8[8192]{0}', space=vmem, size = 0x2000, scoped, tag = 'input window, operand 0, single buffered']
    #allocation3 [shape = 's32[1]{0}', space=sflag, size = 0x4, scoped, tag = 'scoped memory for tpu_custom_call.1']
    #allocation4 [shape = 's32[1]{0}', space=sflag, size = 0x4, scoped, tag = 'scoped memory for tpu_custom_call.1']
    #allocation5 [shape = 'u8[8192]{0}', space=vmem, size = 0x2000, scoped, tag = 'input window, operand 1, single buffered']
    #allocation6 [shape = 's32[1]{0}', space=sflag, size = 0x4, scoped, tag = 'scoped memory for tpu_custom_call.1']
    #allocation7 [shape = 'u8[4096]{0}', space=vmem, size = 0x1000, scoped, tag = 'output window, operand 0, single buffered']
    %7 = vsyncpa [#allocation3], 0
    %8 = vsyncpa [#allocation6], 0
    %9 = vsyncpa [#allocation4], 0
    // Predicated region
    $region2: #{tpu_custom_call.1} parent=1 // pred_check
      _
    $region3: #{tpu_custom_call.1} parent=1 // pred_check_branch
      %11 = sbr.rel (0) target = $region5
    $region4: #{tpu_custom_call.1} parent=1 // pred_region
      %13 = vsyncadd [#allocation3], 0
      %s14 = sshll.u32 %s0, 4
      %s15 = int_to_ptr.hbm [resolvable:$true] %s14
      %s16 = sshll.u32 [#allocation2], 4
      %s17 = int_to_ptr.vmem [resolvable:$true] %s16
      %22 = dma.hbm_to_vmem [thread:$0]  %s15, 256, %s17, [#allocation3], 128, 128, 8
    $region5: #{tpu_custom_call.1} parent=1 // pred_fallthru
      _
    // Predicated region
    $region6: #{tpu_custom_call.1} parent=1 // pred_check
      _
    $region7: #{tpu_custom_call.1} parent=1 // pred_check_branch
      %24 = sbr.rel (0) target = $region9
    $region8: #{tpu_custom_call.1} parent=1 // pred_region
      %26 = vsyncadd [#allocation6], 0
      %s27 = sshll.u32 %s1, 4
      %s28 = int_to_ptr.hbm [resolvable:$true] %s27
      %s29 = sshll.u32 [#allocation5], 4
      %s30 = int_to_ptr.vmem [resolvable:$true] %s29
      %35 = dma.hbm_to_vmem [thread:$0]  %s28, 256, %s30, [#allocation6], 128, 128, 8
    $region9: #{tpu_custom_call.1} parent=1 // pred_fallthru
      _
    // Predicated region
    $region10: #{tpu_custom_call.1} parent=1 // pred_check
      _
    $region11: #{tpu_custom_call.1} parent=1 // pred_check_branch
      %37 = sbr.rel (0) target = $region13
    $region12: #{tpu_custom_call.1} parent=1 // pred_region
      %39 = dma.done [#allocation3], 256
    $region13: #{tpu_custom_call.1} parent=1 // pred_fallthru
      _
    // Predicated region
    $region14: #{tpu_custom_call.1} parent=1 // pred_check
      _
    $region15: #{tpu_custom_call.1} parent=1 // pred_check_branch
      %41 = sbr.rel (0) target = $region17
    $region16: #{tpu_custom_call.1} parent=1 // pred_region
      %43 = dma.done [#allocation6], 256
    $region17: #{tpu_custom_call.1} parent=1 // pred_fallthru
      _
    %v44 = vld [vmem:[#allocation2] sm:$0xff]
    %v45 = vld [vmem:[#allocation2 + $0x8] sm:$0xff]
    %v46 = vld [vmem:[#allocation5] sm:$0xff]
    %v47 = vld [vmem:[#allocation5 + $0x8] sm:$0xff]
    %v48 = vsub.f32 0.0, %v44
    %v49 = vsub.f32 0.0, %v45
    %v50 = vrcp.pop %v46
    %v51 = vmul.f32 %v46, %v50
    %v52 = vsub.f32 1.0, %v51
    %v53 = vmul.f32 %v50, %v52
    %v54 = vadd.f32 %v50, %v53
    %vm55 = vweird.f32 %v46
    %vm56 = vweird.f32 %v50
    %vm57 = vmor %vm55, %vm56
    %v58 = vsel %vm57, %v50, %v54
    %v59 = vand.u32 2147483647, %v46
    %vm60 = vcmp.eq.f32.partialorder %v59, 8.507059e+37
    %v61 = vand.u32 %v46, 2147483648
    %v62 = vor.u32 1.1754944e-38, %v61
    %v63 = vsel %vm60, %v62, %v58
    %v64 = vmul.f32 1.0, %v63
    %v65 = vrcp.pop %v47
    %v66 = vmul.f32 %v47, %v65
    %v67 = vsub.f32 1.0, %v66
    %v68 = vmul.f32 %v65, %v67
    %v69 = vadd.f32 %v65, %v68
    %vm70 = vweird.f32 %v47
    %vm71 = vweird.f32 %v65
    %vm72 = vmor %vm70, %vm71
    %v73 = vsel %vm72, %v65, %v69
    %v74 = vand.u32 2147483647, %v47
    %vm75 = vcmp.eq.f32.partialorder %v74, 8.507059e+37
    %v76 = vand.u32 %v47, 2147483648
    %v77 = vor.u32 1.1754944e-38, %v76
    %v78 = vsel %vm75, %v77, %v73
    %v79 = vmul.f32 1.0, %v78
    %v80 = vmul.f32 %v48, %v64
    %v81 = vmul.f32 %v49, %v79
    %v82 = vrcp.pop -1.0
    %v83 = vmul.f32 -1.0, %v82
    %v84 = vsub.f32 1.0, %v83
    %v85 = vmul.f32 %v82, %v84
    %v86 = vadd.f32 %v82, %v85
    %vm87 = vweird.f32 %v82
    %v88 = vsel %vm87, %v82, %v86
    %v89 = vmul.f32 %v80, %v88
    %v90 = vmul.f32 %v81, %v88
    %v91 = vadd.f32 %v89, inf
    %v92 = vadd.f32 %v90, inf
    %v93 = vadd.f32 %v91, %v92
    %94 = vst [vmem:[#allocation7] sm:$0xff] %v93
    // Predicated region
    $region18: #{tpu_custom_call.1} parent=1 // pred_check
      _
    $region19: #{tpu_custom_call.1} parent=1 // pred_check_branch
      %96 = sbr.rel (0) target = $region21
    $region20: #{tpu_custom_call.1} parent=1 // pred_region
      %98 = vsyncadd [#allocation4], 0
      %s100 = sshll.u32 [#allocation7], 4
      %s101 = int_to_ptr.vmem [resolvable:$true] %s100
      %s102 = sshll.u32 %s2, 4
      %s103 = int_to_ptr.hbm [resolvable:$true] %s102
      %105 = dma.vmem_to_hbm [thread:$0]  %s101, 128, %s103, [#allocation4]
    $region21: #{tpu_custom_call.1} parent=1 // pred_fallthru
      _
    // Predicated region
    $region22: #{tpu_custom_call.1} parent=1 // pred_check
      _
    $region23: #{tpu_custom_call.1} parent=1 // pred_check_branch
      %107 = sbr.rel (0) target = $region25
    $region24: #{tpu_custom_call.1} parent=1 // pred_region
      %109 = dma.done [#allocation4], 128
    $region25: #{tpu_custom_call.1} parent=1 // pred_fallthru
      _
    %110 = vsyncpa [#allocation3], 1
    %111 = vsyncpa [#allocation6], 1
    %112 = vsyncpa [#allocation4], 1

</llo_original>
